<compile_context>
chip_gen: v5e
topology: v5e:2x2
jax: 0.10.0
libtpu: 0.0.40
codegen_flags: <defaults>
</compile_context>

<pallas_src>
import jax
import jax.numpy as jnp
from jax.experimental import pallas as pl
from jax.experimental.pallas import tpu as pltpu

_LANE = 128
_SUBLANE = 8


def _round_up(n, m):
    return ((n + m - 1) // m) * m


def _const_map(i):
    return (0, 0)


def _vmem_cap_bytes():
    """Physical VMEM with ~20% headroom for compiler-internal scratch."""
    try:
        info = pltpu.get_tpu_info()
        cap = getattr(info, "vmem_capacity_bytes", None)
        if cap:
            return int(cap * 0.8)  # ~102 MiB on v5e/v6e (128 MiB), ~51 MiB on v7x (64 MiB)
    except Exception:
        pass
    return 48 * 1024 * 1024        # conservative (v7x-safe) fallback


# ----------------------------- kernels --------------------------------------


def _linear_kernel(x_ref, w_ref, b_ref, o_ref):
    # y = x @ W + b  (W already (in, out_pad), b is (1, out_pad), f32)
    xv = x_ref[...].astype(w_ref.dtype)          # cast in-kernel (no wrapper pass)
    y = jnp.dot(xv, w_ref[...], preferred_element_type=jnp.float32)
    o_ref[...] = (y + b_ref[...]).astype(o_ref.dtype)


def _mlp_sigmoid_kernel(x_ref, w1_ref, b1_ref, w2_ref, b2_ref, o_ref):
    # h = sigmoid(x @ W1 + b1) ; y = h @ W2 + b2   (all padded, lane-dense)
    xv = x_ref[...].astype(w1_ref.dtype)
    h = jnp.dot(xv, w1_ref[...], preferred_element_type=jnp.float32)
    # sigmoid(z) = 0.5*(tanh(z/2)+1): single EUP push per element (f32, v5e-safe).
    h = 0.5 * (jnp.tanh(0.5 * (h + b1_ref[...])) + 1.0)
    y = jnp.dot(h.astype(w2_ref.dtype), w2_ref[...],
                preferred_element_type=jnp.float32)
    o_ref[...] = (y + b2_ref[...]).astype(o_ref.dtype)


# ----------------------------- param prep (hoisted) --------------------------


def prepare_params(params, compute_dtype=jnp.bfloat16):
    """One-time prep of PyTorch-layout params for the kernel.

    Input layout (PyTorch nn.Linear):
      {"w": (C, D), "b": (C,)}                               -> single Linear
      {"w1": (H, D), "b1": (H,), "w2": (C, H), "b2": (C,)}   -> Linear-Sigmoid-Linear

    Returns pre-transposed (in, out_pad) weights (default bf16; pass
    compute_dtype=jnp.float32 for exact math) with out-features padded to a
    multiple of 128, plus (1, out_pad) f32 biases.  Do this once, reuse per call.
    """
    def prep_linear(w, b, in_pad=None):
        out_f, in_f = w.shape
        in_p = in_f if in_pad is None else in_pad
        out_p = _round_up(out_f, _LANE)
        wt = jnp.zeros((in_p, out_p), compute_dtype)
        wt = wt.at[:in_f, :out_f].set(w.T.astype(compute_dtype))
        bp = jnp.zeros((1, out_p), jnp.float32).at[:, :out_f].set(b.astype(jnp.float32))
        return wt, bp, out_f

    if "w1" in params:
        w1, b1, _hid = prep_linear(params["w1"], params["b1"])
        h_pad = w1.shape[1]
        # zero-pad W2's input rows to h_pad so padded hidden lanes contribute 0
        w2, b2, n_cls = prep_linear(params["w2"], params["b2"], in_pad=h_pad)
        return {"kind": "mlp", "w1": w1, "b1": b1, "w2": w2, "b2": b2,
                "num_classes": n_cls}
    else:
        w, b, n_cls = prep_linear(params["w"], params["b"])
        return {"kind": "linear", "w": w, "b": b, "num_classes": n_cls}


# ----------------------------- forward ---------------------------------------


def ctoy_forward(x, prepped, *, batch_tile=512, out_dtype=jnp.float32):
    """Forward pass of CtoY_classifier on prepared params."""
    B, D = x.shape
    n_cls = prepped["num_classes"]

    # Batch tile: multiple of 8 sublanes, large by default, capped to the batch.
    TB = min(_round_up(max(batch_tile, _SUBLANE), _SUBLANE), _round_up(B, _SUBLANE))
    # v7x megacore: ensure >=2 grid steps when the batch is big enough so that
    # dimension_semantics=("parallel",) actually shards across both TensorCores.
    if B > 2 * _SUBLANE and pl.cdiv(B, TB) < 2:
        TB = _round_up(pl.cdiv(B, 2), _SUBLANE)
    grid = (pl.cdiv(B, TB),)   # ragged last tile: reads padded, stores masked

    if prepped["kind"] == "mlp":
        w1, b1, w2, b2 = prepped["w1"], prepped["b1"], prepped["w2"], prepped["b2"]
        H_pad, C_pad = w1.shape[1], w2.shape[1]
        kernel = _mlp_sigmoid_kernel
        weight_args = (w1, b1, w2, b2)
        weight_shapes = [(D, H_pad), (1, H_pad), (H_pad, C_pad), (1, C_pad)]
        flops = 2 * B * D * H_pad + 2 * B * H_pad * C_pad
        transcendentals = B * H_pad
    else:
        w, b = prepped["w"], prepped["b"]
        C_pad = w.shape[1]
        kernel = _linear_kernel
        weight_args = (w, b)
        weight_shapes = [(D, C_pad), (1, C_pad)]
        flops = 2 * B * D * C_pad
        transcendentals = 0

    param_bytes = sum(a.size * a.dtype.itemsize for a in weight_args)
    out_itemsize = jnp.dtype(out_dtype).itemsize
    x_tile_bytes = TB * D * x.dtype.itemsize
    out_tile_bytes = TB * C_pad * out_itemsize

    cost = pl.CostEstimate(
        flops=int(flops),
        transcendentals=int(transcendentals),
        bytes_accessed=int(B * D * x.dtype.itemsize + param_bytes
                           + B * C_pad * out_itemsize),
    )

    x_spec = pl.BlockSpec((TB, D), lambda i: (i, 0))
    out_spec = pl.BlockSpec((TB, C_pad), lambda i: (i, 0))
    vmem_cap = _vmem_cap_bytes()

    last_err = None
    for single_buffer_weights in (True, False):
        # Grid-invariant weights are never re-fetched -> single-buffer them so
        # only 1x param_bytes stays resident; fall back to default double
        # buffering if pl.Buffered(1) isn't supported on this pallas_call path.
        try:
            if single_buffer_weights:
                weight_specs = [
                    pl.BlockSpec(s, _const_map, pipeline_mode=pl.Buffered(1))
                    for s in weight_shapes
                ]
            else:
                weight_specs = [pl.BlockSpec(s, _const_map) for s in weight_shapes]
        except Exception as err:
            last_err = err
            continue

        buf_mult = 1 if single_buffer_weights else 2
        # Double-buffered x/out tiles + (single|double)-buffered params + headroom.
        vmem_est = (2 * (x_tile_bytes + out_tile_bytes)
                    + buf_mult * param_bytes + (2 << 20))
        vmem_limit = int(min(vmem_cap, max(4 << 20, vmem_est)))

        try:
            y = pl.pallas_call(
                kernel,
                out_shape=jax.ShapeDtypeStruct((B, C_pad), out_dtype),
                grid=grid,
                in_specs=[x_spec] + weight_specs,
                out_specs=out_spec,
                compiler_params=pltpu.CompilerParams(
                    dimension_semantics=("parallel",),
                    vmem_limit_bytes=vmem_limit,
                ),
                cost_estimate=cost,
            )(x, *weight_args)
            return y[:, :n_cls]
        except Exception as err:
            last_err = err   # retry without Buffered(1)
    raise last_err


# ----------------------------- init / reference ------------------------------


def init_params(key, input_dim, num_classes, hidden_dim=None, dtype=jnp.float32):
    """Deterministic init matching nn.Linear shapes (uniform +/- 1/sqrt(fan_in))."""
    def linear_init(k, out_f, in_f):
        kw, kb = jax.random.split(k)
        bound = 1.0 / (in_f ** 0.5)
        w = jax.random.uniform(kw, (out_f, in_f), dtype, -bound, bound)
        b = jax.random.uniform(kb, (out_f,), dtype, -bound, bound)
        return w, b

    if hidden_dim is not None:
        k1, k2 = jax.random.split(key)
        w1, b1 = linear_init(k1, hidden_dim, input_dim)
        w2, b2 = linear_init(k2, num_classes, hidden_dim)
        return {"w1": w1, "b1": b1, "w2": w2, "b2": b2}
    else:
        w, b = linear_init(key, num_classes, input_dim)
        return {"w": w, "b": b}


def ctoy_forward_ref(x, params):
    if "w1" in params:
        h = jax.nn.sigmoid(x @ params["w1"].T + params["b1"])
        return h @ params["w2"].T + params["b2"]
    return x @ params["w"].T + params["b"]


# ----------------------------- main ------------------------------------------


if __name__ == "__main__":
    key = jax.random.PRNGKey(0)
    kx, kp1, kp2 = jax.random.split(key, 3)

    B, D, H, C = 8, 32, 32, 10
    x = jax.random.normal(kx, (B, D), jnp.float32)

    # Variant 1: Linear -> Sigmoid -> Linear, exact f32 compute path.
    params_mlp = init_params(kp1, D, C, hidden_dim=H)
    prepped_f32 = prepare_params(params_mlp, compute_dtype=jnp.float32)
    y_mlp = jax.block_until_ready(ctoy_forward(x, prepped_f32))
    y_mlp_ref = ctoy_forward_ref(x, params_mlp)
    assert y_mlp.shape == (B, C)
    assert jnp.allclose(y_mlp, y_mlp_ref, atol=1e-4, rtol=1e-4)

    # Same model, default bf16 weights/activations (MXU-native on v6e/v7x).
    prepped_bf16 = prepare_params(params_mlp)
    y_bf = jax.block_until_ready(ctoy_forward(x, prepped_bf16))
    assert y_bf.shape == (B, C)
    assert jnp.allclose(y_bf, y_mlp_ref, atol=1e-1, rtol=1e-1)

    # Variant 2: single Linear (hidden_dim=None), f32.
    params_lin = init_params(kp2, D, C, hidden_dim=None)
    prepped_lin = prepare_params(params_lin, compute_dtype=jnp.float32)
    y_lin = jax.block_until_ready(ctoy_forward(x, prepped_lin))
    y_lin_ref = ctoy_forward_ref(x, params_lin)
    assert y_lin.shape == (B, C)
    assert jnp.allclose(y_lin, y_lin_ref, atol=1e-5, rtol=1e-5)

    # Ragged batch: exercises the masked partial last tile (no pad copy of x).
    xb = jax.random.normal(kx, (13, D), jnp.float32)
    yb = jax.block_until_ready(ctoy_forward(xb, prepped_f32))
    assert yb.shape == (13, C)
    assert jnp.allclose(yb, ctoy_forward_ref(xb, params_mlp), atol=1e-4, rtol=1e-4)

    # Batch large enough to force >=2 grid steps (megacore sharding path).
    xc = jax.random.normal(kx, (40, D), jnp.float32)
    yc = jax.block_until_ready(ctoy_forward(xc, prepped_f32))
    assert yc.shape == (40, C)
    assert jnp.allclose(yc, ctoy_forward_ref(xc, params_mlp), atol=1e-4, rtol=1e-4)

    print("KERNEL_OK")
</pallas_src>

<mosaic_0001>
module attributes {stable_mosaic.version = 11 : i64} {
  func.func @_mlp_sigmoid_kernel(%arg0: i32, %arg1: memref<8x32xf32, #tpu.memory_space<vmem>>, %arg2: memref<32x128xf32, #tpu.memory_space<vmem>>, %arg3: memref<1x128xf32, #tpu.memory_space<vmem>>, %arg4: memref<128x128xf32, #tpu.memory_space<vmem>>, %arg5: memref<1x128xf32, #tpu.memory_space<vmem>>, %arg6: memref<8x128xf32, #tpu.memory_space<vmem>>) attributes {dimension_semantics = [#tpu.dimension_semantics<parallel>], iteration_bounds = array<i64: 1>, scalar_prefetch = 0 : i64, scratch_operands = 0 : i64, tpu.core_type = #tpu.core_type<tc>, window_params = [{transform_indices = @transform_0, window_bounds = array<i64: 8, 32>}, {pipeline_mode = #tpu.pipeline_mode<synchronous>, transform_indices = @transform_1, window_bounds = array<i64: 32, 128>}, {pipeline_mode = #tpu.pipeline_mode<synchronous>, transform_indices = @transform_2, window_bounds = array<i64: 1, 128>}, {pipeline_mode = #tpu.pipeline_mode<synchronous>, transform_indices = @transform_3, window_bounds = array<i64: 128, 128>}, {pipeline_mode = #tpu.pipeline_mode<synchronous>, transform_indices = @transform_4, window_bounds = array<i64: 1, 128>}, {transform_indices = @transform_5, window_bounds = array<i64: 8, 128>}]} {
    %c0 = arith.constant 0 : index
    %c0_0 = arith.constant 0 : index
    %0 = vector.load %arg1[%c0, %c0_0] : memref<8x32xf32, #tpu.memory_space<vmem>>, vector<8x32xf32>
    %c0_1 = arith.constant 0 : index
    %c0_2 = arith.constant 0 : index
    %1 = vector.load %arg2[%c0_1, %c0_2] : memref<32x128xf32, #tpu.memory_space<vmem>>, vector<32x128xf32>
    %cst = arith.constant dense<0.000000e+00> : vector<8x128xf32>
    %2 = tpu.matmul %0, %1, %cst {dimension_numbers = #tpu.dot_dimension_numbers<[1], [0], [0], [1], [0, 0, 1, 1], [], []>} : vector<8x32xf32>, vector<32x128xf32>, vector<8x128xf32> -> vector<8x128xf32>
    %c0_3 = arith.constant 0 : index
    %c0_4 = arith.constant 0 : index
    %3 = vector.load %arg3[%c0_3, %c0_4] : memref<1x128xf32, #tpu.memory_space<vmem>>, vector<1x128xf32>
    %4 = vector.broadcast %3 : vector<1x128xf32> to vector<8x128xf32>
    %5 = arith.addf %2, %4 : vector<8x128xf32>
    %cst_5 = arith.constant 5.000000e-01 : f32
    %6 = vector.broadcast %cst_5 : f32 to vector<8x128xf32>
    %7 = arith.mulf %6, %5 : vector<8x128xf32>
    %8 = math.tanh %7 : vector<8x128xf32>
    %cst_6 = arith.constant 1.000000e+00 : f32
    %9 = vector.broadcast %cst_6 : f32 to vector<8x128xf32>
    %10 = arith.addf %8, %9 : vector<8x128xf32>
    %cst_7 = arith.constant 5.000000e-01 : f32
    %11 = vector.broadcast %cst_7 : f32 to vector<8x128xf32>
    %12 = arith.mulf %11, %10 : vector<8x128xf32>
    %c0_8 = arith.constant 0 : index
    %c0_9 = arith.constant 0 : index
    %13 = vector.load %arg4[%c0_8, %c0_9] : memref<128x128xf32, #tpu.memory_space<vmem>>, vector<128x128xf32>
    %cst_10 = arith.constant dense<0.000000e+00> : vector<8x128xf32>
    %14 = tpu.matmul %12, %13, %cst_10 {dimension_numbers = #tpu.dot_dimension_numbers<[1], [0], [0], [1], [0, 0, 1, 1], [], []>} : vector<8x128xf32>, vector<128x128xf32>, vector<8x128xf32> -> vector<8x128xf32>
    %c0_11 = arith.constant 0 : index
    %c0_12 = arith.constant 0 : index
    %15 = vector.load %arg5[%c0_11, %c0_12] : memref<1x128xf32, #tpu.memory_space<vmem>>, vector<1x128xf32>
    %16 = vector.broadcast %15 : vector<1x128xf32> to vector<8x128xf32>
    %17 = arith.addf %14, %16 : vector<8x128xf32>
    %c0_13 = arith.constant 0 : index
    %c0_14 = arith.constant 0 : index
    %18 = vector.load %arg6[%c0_13, %c0_14] : memref<8x128xf32, #tpu.memory_space<vmem>>, vector<8x128xf32>
    tpu.vector_store %arg6[%c0_13, %c0_14], %17 {strides = array<i32>} : memref<8x128xf32, #tpu.memory_space<vmem>>, vector<8x128xf32>,
    return
  }
  func.func @transform_0(%arg0: i32) -> (i32, i32) {
    %c0_i32 = arith.constant 0 : i32
    %c0_i32_0 = arith.constant 0 : i32
    return %arg0, %c0_i32 : i32, i32
  }
  func.func @transform_1(%arg0: i32) -> (i32, i32) {
    %c0_i32 = arith.constant 0 : i32
    %c0_i32_0 = arith.constant 0 : i32
    %c0_i32_1 = arith.constant 0 : i32
    return %c0_i32, %c0_i32_0 : i32, i32
  }
  func.func @transform_2(%arg0: i32) -> (i32, i32) {
    %c0_i32 = arith.constant 0 : i32
    %c0_i32_0 = arith.constant 0 : i32
    %c0_i32_1 = arith.constant 0 : i32
    return %c0_i32, %c0_i32_0 : i32, i32
  }
  func.func @transform_3(%arg0: i32) -> (i32, i32) {
    %c0_i32 = arith.constant 0 : i32
    %c0_i32_0 = arith.constant 0 : i32
    %c0_i32_1 = arith.constant 0 : i32
    return %c0_i32, %c0_i32_0 : i32, i32
  }
  func.func @transform_4(%arg0: i32) -> (i32, i32) {
    %c0_i32 = arith.constant 0 : i32
    %c0_i32_0 = arith.constant 0 : i32
    %c0_i32_1 = arith.constant 0 : i32
    return %c0_i32, %c0_i32_0 : i32, i32
  }
  func.func @transform_5(%arg0: i32) -> (i32, i32) {
    %c0_i32 = arith.constant 0 : i32
    %c0_i32_0 = arith.constant 0 : i32
    return %arg0, %c0_i32 : i32, i32
  }
}

module attributes {stable_mosaic.version = 11 : i64} {
  func.func @_mlp_sigmoid_kernel(%arg0: i32, %arg1: memref<8x32xf32, #tpu.memory_space<vmem>>, %arg2: memref<32x128xf32, #tpu.memory_space<vmem>>, %arg3: memref<1x128xf32, #tpu.memory_space<vmem>>, %arg4: memref<128x128xf32, #tpu.memory_space<vmem>>, %arg5: memref<1x128xf32, #tpu.memory_space<vmem>>, %arg6: memref<8x128xf32, #tpu.memory_space<vmem>>) attributes {dimension_semantics = [#tpu.dimension_semantics<parallel>], iteration_bounds = array<i64: 1>, scalar_prefetch = 0 : i64, scratch_operands = 0 : i64, tpu.core_type = #tpu.core_type<tc>, window_params = [{transform_indices = @transform_0, window_bounds = array<i64: 8, 32>}, {pipeline_mode = #tpu.pipeline_mode<synchronous>, transform_indices = @transform_1, window_bounds = array<i64: 32, 128>}, {pipeline_mode = #tpu.pipeline_mode<synchronous>, transform_indices = @transform_2, window_bounds = array<i64: 1, 128>}, {pipeline_mode = #tpu.pipeline_mode<synchronous>, transform_indices = @transform_3, window_bounds = array<i64: 128, 128>}, {pipeline_mode = #tpu.pipeline_mode<synchronous>, transform_indices = @transform_4, window_bounds = array<i64: 1, 128>}, {transform_indices = @transform_5, window_bounds = array<i64: 8, 128>}]} {
    %c0 = arith.constant 0 : index
    %c0_0 = arith.constant 0 : index
    %0 = vector.load %arg1[%c0, %c0_0] : memref<8x32xf32, #tpu.memory_space<vmem>>, vector<8x32xf32>
    %c0_1 = arith.constant 0 : index
    %c0_2 = arith.constant 0 : index
    %1 = vector.load %arg2[%c0_1, %c0_2] : memref<32x128xf32, #tpu.memory_space<vmem>>, vector<32x128xf32>
    %cst = arith.constant dense<0.000000e+00> : vector<8x128xf32>
    %2 = tpu.matmul %0, %1, %cst {dimension_numbers = #tpu.dot_dimension_numbers<[1], [0], [0], [1], [0, 0, 1, 1], [], []>} : vector<8x32xf32>, vector<32x128xf32>, vector<8x128xf32> -> vector<8x128xf32>
    %c0_3 = arith.constant 0 : index
    %c0_4 = arith.constant 0 : index
    %3 = vector.load %arg3[%c0_3, %c0_4] : memref<1x128xf32, #tpu.memory_space<vmem>>, vector<1x128xf32>
    %4 = vector.broadcast %3 : vector<1x128xf32> to vector<8x128xf32>
    %5 = arith.addf %2, %4 : vector<8x128xf32>
    %cst_5 = arith.constant 5.000000e-01 : f32
    %6 = vector.broadcast %cst_5 : f32 to vector<8x128xf32>
    %7 = arith.mulf %6, %5 : vector<8x128xf32>
    %8 = math.tanh %7 : vector<8x128xf32>
    %cst_6 = arith.constant 1.000000e+00 : f32
    %9 = vector.broadcast %cst_6 : f32 to vector<8x128xf32>
    %10 = arith.addf %8, %9 : vector<8x128xf32>
    %cst_7 = arith.constant 5.000000e-01 : f32
    %11 = vector.broadcast %cst_7 : f32 to vector<8x128xf32>
    %12 = arith.mulf %11, %10 : vector<8x128xf32>
    %c0_8 = arith.constant 0 : index
    %c0_9 = arith.constant 0 : index
    %13 = vector.load %arg4[%c0_8, %c0_9] : memref<128x128xf32, #tpu.memory_space<vmem>>, vector<128x128xf32>
    %cst_10 = arith.constant dense<0.000000e+00> : vector<8x128xf32>
    %14 = tpu.matmul %12, %13, %cst_10 {dimension_numbers = #tpu.dot_dimension_numbers<[1], [0], [0], [1], [0, 0, 1, 1], [], []>} : vector<8x128xf32>, vector<128x128xf32>, vector<8x128xf32> -> vector<8x128xf32>
    %c0_11 = arith.constant 0 : index
    %c0_12 = arith.constant 0 : index
    %15 = vector.load %arg5[%c0_11, %c0_12] : memref<1x128xf32, #tpu.memory_space<vmem>>, vector<1x128xf32>
    %16 = vector.broadcast %15 : vector<1x128xf32> to vector<8x128xf32>
    %17 = arith.addf %14, %16 : vector<8x128xf32>
    %c0_13 = arith.constant 0 : index
    %c0_14 = arith.constant 0 : index
    %18 = vector.load %arg6[%c0_13, %c0_14] : memref<8x128xf32, #tpu.memory_space<vmem>>, vector<8x128xf32>
    tpu.vector_store %arg6[%c0_13, %c0_14], %17 {strides = array<i32>} : memref<8x128xf32, #tpu.memory_space<vmem>>, vector<8x128xf32>,
    return
  }
  func.func @transform_0(%arg0: i32) -> (i32, i32) {
    %c0_i32 = arith.constant 0 : i32
    %c0_i32_0 = arith.constant 0 : i32
    return %arg0, %c0_i32 : i32, i32
  }
  func.func @transform_1(%arg0: i32) -> (i32, i32) {
    %c0_i32 = arith.constant 0 : i32
    %c0_i32_0 = arith.constant 0 : i32
    %c0_i32_1 = arith.constant 0 : i32
    return %c0_i32, %c0_i32_0 : i32, i32
  }
  func.func @transform_2(%arg0: i32) -> (i32, i32) {
    %c0_i32 = arith.constant 0 : i32
    %c0_i32_0 = arith.constant 0 : i32
    %c0_i32_1 = arith.constant 0 : i32
    return %c0_i32, %c0_i32_0 : i32, i32
  }
  func.func @transform_3(%arg0: i32) -> (i32, i32) {
    %c0_i32 = arith.constant 0 : i32
    %c0_i32_0 = arith.constant 0 : i32
    %c0_i32_1 = arith.constant 0 : i32
    return %c0_i32, %c0_i32_0 : i32, i32
  }
  func.func @transform_4(%arg0: i32) -> (i32, i32) {
    %c0_i32 = arith.constant 0 : i32
    %c0_i32_0 = arith.constant 0 : i32
    %c0_i32_1 = arith.constant 0 : i32
    return %c0_i32, %c0_i32_0 : i32, i32
  }
  func.func @transform_5(%arg0: i32) -> (i32, i32) {
    %c0_i32 = arith.constant 0 : i32
    %c0_i32_0 = arith.constant 0 : i32
    return %arg0, %c0_i32 : i32, i32
  }
}

</mosaic_0001>

<llo_original>
// kernel: tpu_custom_call.1
$region0: #{tpu_custom_call.1}
  #allocation0 [shape = 'u32[]', space=smem, size = 0x4, offset = 0x4, fixed_abs, tag = 'smem constant byte address 0x4 - core index']
  #allocation1 [shape = 'u32[72,128]{1,0:T(1,128)}', space=vmem, size = 0x9000, scoped, tag = 'internal scratch']
  %s0 = inlined_call_operand.hbm [shape: f32[8,32], index: 0, kind: input, shape index: {}]
  %s1 = inlined_call_operand.hbm [shape: f32[32,128], index: 1, kind: input, shape index: {}]
  %s2 = inlined_call_operand.vmem [shape: f32[1,128], index: 2, kind: input, shape index: {}]
  %s3 = inlined_call_operand.hbm [shape: f32[128,128], index: 3, kind: input, shape index: {}]
  %s4 = inlined_call_operand.vmem [shape: f32[1,128], index: 4, kind: input, shape index: {}]
  %s5 = inlined_call_operand.hbm [shape: f32[8,128], index: 5, kind: output, shape index: {}]
  %s6 = sld [smem:[#allocation0]]
  $region42: #{tpu_custom_call.1} parent=0
    _
  %s8 = ssub.s32 1, %s6
  %s9 = scalar_select 0, %s8, %s6
  $region1: #{tpu_custom_call.1} parent=0
    #allocation2 [shape = 'u8[4096]{0}', space=vmem, size = 0x1000, scoped, tag = 'input window, operand 0, single buffered']
    #allocation3 [shape = 's32[1]{0}', space=sflag, size = 0x4, scoped, tag = 'scoped memory for tpu_custom_call.1']
    #allocation4 [shape = 's32[1]{0}', space=sflag, size = 0x4, scoped, tag = 'scoped memory for tpu_custom_call.1']
    #allocation5 [shape = 'u8[16384]{0}', space=vmem, size = 0x4000, scoped, tag = 'input window, operand 1, single buffered']
    #allocation6 [shape = 's32[1]{0}', space=sflag, size = 0x4, scoped, tag = 'scoped memory for tpu_custom_call.1']
    #allocation7 [shape = 'u8[65536]{0}', space=vmem, size = 0x10000, scoped, tag = 'input window, operand 3, single buffered']
    #allocation8 [shape = 'u8[4096]{0}', space=vmem, size = 0x1000, scoped, tag = 'output window, operand 0, single buffered']
    %10 = vsyncpa [#allocation3], 0
    %11 = vsyncpa [#allocation6], 0
    %12 = vsyncpa [#allocation4], 0
    // Predicated region
    $region2: #{tpu_custom_call.1} parent=1 // pred_check
      _
    $region3: #{tpu_custom_call.1} parent=1 // pred_check_branch
      %14 = sbr.rel (0) target = $region5
    $region4: #{tpu_custom_call.1} parent=1 // pred_region
      %16 = vsyncadd [#allocation3], 0
      %s18 = sshll.u32 %s0, 4
      %s19 = int_to_ptr.hbm [resolvable:$true] %s18
      %s20 = sshll.u32 [#allocation2], 4
      %s21 = int_to_ptr.vmem [resolvable:$true] %s20
      %23 = dma.hbm_to_vmem [thread:$0]  %s19, 128, %s21, [#allocation3]
    $region5: #{tpu_custom_call.1} parent=1 // pred_fallthru
      _
    // Predicated region
    $region6: #{tpu_custom_call.1} parent=1 // pred_check
      _
    $region7: #{tpu_custom_call.1} parent=1 // pred_check_branch
      %25 = sbr.rel (0) target = $region9
    $region8: #{tpu_custom_call.1} parent=1 // pred_region
      %27 = vsyncadd [#allocation6], 0
      %s28 = sshll.u32 %s1, 4
      %s29 = int_to_ptr.hbm [resolvable:$true] %s28
      %s30 = sshll.u32 [#allocation5], 4
      %s31 = int_to_ptr.vmem [resolvable:$true] %s30
      %36 = dma.hbm_to_vmem [thread:$0]  %s29, 512, %s31, [#allocation6], 128, 128, 8
    $region9: #{tpu_custom_call.1} parent=1 // pred_fallthru
      _
    // Predicated region
    $region10: #{tpu_custom_call.1} parent=1 // pred_check
      _
    $region11: #{tpu_custom_call.1} parent=1 // pred_check_branch
      %38 = sbr.rel (0) target = $region13
    $region12: #{tpu_custom_call.1} parent=1 // pred_region
      _
    $region13: #{tpu_custom_call.1} parent=1 // pred_fallthru
      _
    // Predicated region
    $region14: #{tpu_custom_call.1} parent=1 // pred_check
      _
    $region15: #{tpu_custom_call.1} parent=1 // pred_check_branch
      %40 = sbr.rel (0) target = $region17
    $region16: #{tpu_custom_call.1} parent=1 // pred_region
      %42 = vsyncadd [#allocation6], 0
      %s43 = sshll.u32 %s3, 4
      %s44 = int_to_ptr.hbm [resolvable:$true] %s43
      %s45 = sshll.u32 [#allocation7], 4
      %s46 = int_to_ptr.vmem [resolvable:$true] %s45
      %51 = dma.hbm_to_vmem [thread:$0]  %s44, 2048, %s46, [#allocation6], 128, 128, 8
    $region17: #{tpu_custom_call.1} parent=1 // pred_fallthru
      _
    // Predicated region
    $region18: #{tpu_custom_call.1} parent=1 // pred_check
      _
    $region19: #{tpu_custom_call.1} parent=1 // pred_check_branch
      %53 = sbr.rel (0) target = $region21
    $region20: #{tpu_custom_call.1} parent=1 // pred_region
      _
    $region21: #{tpu_custom_call.1} parent=1 // pred_fallthru
      _
    // Predicated region
    $region22: #{tpu_custom_call.1} parent=1 // pred_check
      _
    $region23: #{tpu_custom_call.1} parent=1 // pred_check_branch
      %55 = sbr.rel (0) target = $region25
    $region24: #{tpu_custom_call.1} parent=1 // pred_region
      %57 = dma.done [#allocation3], 128
    $region25: #{tpu_custom_call.1} parent=1 // pred_fallthru
      _
    // Predicated region
    $region26: #{tpu_custom_call.1} parent=1 // pred_check
      _
    $region27: #{tpu_custom_call.1} parent=1 // pred_check_branch
      %59 = sbr.rel (0) target = $region29
    $region28: #{tpu_custom_call.1} parent=1 // pred_region
      %61 = dma.done [#allocation6], 512
    $region29: #{tpu_custom_call.1} parent=1 // pred_fallthru
      _
    // Predicated region
    $region30: #{tpu_custom_call.1} parent=1 // pred_check
      _
    $region31: #{tpu_custom_call.1} parent=1 // pred_check_branch
      %63 = sbr.rel (0) target = $region33
    $region32: #{tpu_custom_call.1} parent=1 // pred_region
      %65 = dma.done [#allocation6], 2048
    $region33: #{tpu_custom_call.1} parent=1 // pred_fallthru
      _
    %v66 = vld [vmem:[#allocation2] sm:$0xff]
    %v67 = vld [vmem:[#allocation5] sm:$0xff]
    %v68 = vld [vmem:[#allocation5 + $0x8] sm:$0xff]
    %v69 = vld [vmem:[#allocation5 + $0x10] sm:$0xff]
    %v70 = vld [vmem:[#allocation5 + $0x18] sm:$0xff]
    %v71 = vld [vmem:[%s2] sm:$0x1]
    %v73 = vperm.slane %v71, 0
    %vm75 = vcmask 261120
    %v77 = vsel %vm75, %v66, 0
    %79 = vmatpush.msra.mxu0 0.0
    %80 = vmatpush.msra.mxu0 0.0
    %81 = vmatpush.msra.mxu0 0.0
    %82 = vmatpush.msra.mxu0 0.0
    %83 = vmatpush.msra.mxu0 0.0
    %84 = vmatpush.msra.mxu0 0.0
    %85 = vmatpush.msra.mxu0 0.0
    %86 = vmatpush.msra.mxu0 0.0
    %87 = vmatpush.msra.mxu0 0.0
    %88 = vmatpush.msra.mxu0 0.0
    %89 = vmatpush.msra.mxu0 0.0
    %90 = vmatpush.msra.mxu0 0.0
    %91 = vmatpush.msra.mxu0 %v70
    %92 = vmatpush.msra.mxu0 %v69
    %93 = vmatpush.msra.mxu0 %v68
    %94 = vmatpush.msra.mxu0 %v67
    %95 = vmatmul.f32.gmra.mxu0 %v77
    %v96 = vpop.f32.mrf.mxu0
    %v97 = vadd.f32 %v73, %v96
    %98 = vdwg.mxu0
    %v99 = vmul.f32 %v97, 0.5
    %v100 = vtanh.pop %v99
    %v101 = vadd.f32 %v100, 1.0
    %v102 = vmul.f32 %v101, 0.5
    %v103 = vld [vmem:[#allocation7] sm:$0xff]
    %v104 = vld [vmem:[#allocation7 + $0x8] sm:$0xff]
    %v105 = vld [vmem:[#allocation7 + $0x10] sm:$0xff]
    %v106 = vld [vmem:[#allocation7 + $0x18] sm:$0xff]
    %v107 = vld [vmem:[#allocation7 + $0x20] sm:$0xff]
    %v108 = vld [vmem:[#allocation7 + $0x28] sm:$0xff]
    %v109 = vld [vmem:[#allocation7 + $0x30] sm:$0xff]
    %v110 = vld [vmem:[#allocation7 + $0x38] sm:$0xff]
    %v111 = vld [vmem:[#allocation7 + $0x40] sm:$0xff]
    %v112 = vld [vmem:[#allocation7 + $0x48] sm:$0xff]
    %v113 = vld [vmem:[#allocation7 + $0x50] sm:$0xff]
    %v114 = vld [vmem:[#allocation7 + $0x58] sm:$0xff]
    %v115 = vld [vmem:[#allocation7 + $0x60] sm:$0xff]
    %v116 = vld [vmem:[#allocation7 + $0x68] sm:$0xff]
    %v117 = vld [vmem:[#allocation7 + $0x70] sm:$0xff]
    %v118 = vld [vmem:[#allocation7 + $0x78] sm:$0xff]
    %v119 = vld [vmem:[%s4] sm:$0x1]
    %v121 = vperm.slane %v119, 0
    %123 = vmatpush.msra.mxu0 %v118
    %124 = vmatpush.msra.mxu0 %v117
    %125 = vmatpush.msra.mxu0 %v116
    %126 = vmatpush.msra.mxu0 %v115
    %127 = vmatpush.msra.mxu0 %v114
    %128 = vmatpush.msra.mxu0 %v113
    %129 = vmatpush.msra.mxu0 %v112
    %130 = vmatpush.msra.mxu0 %v111
    %131 = vmatpush.msra.mxu0 %v110
    %132 = vmatpush.msra.mxu0 %v109
    %133 = vmatpush.msra.mxu0 %v108
    %134 = vmatpush.msra.mxu0 %v107
    %135 = vmatpush.msra.mxu0 %v106
    %136 = vmatpush.msra.mxu0 %v105
    %137 = vmatpush.msra.mxu0 %v104
    %138 = vmatpush.msra.mxu0 %v103
    %139 = vmatmul.f32.gmra.mxu0 %v102
    %v140 = vpop.f32.mrf.mxu0
    %v141 = vadd.f32 %v121, %v140
    %142 = vdwg.mxu0
    %143 = vst [vmem:[#allocation8] sm:$0xff] %v141
    // Predicated region
    $region34: #{tpu_custom_call.1} parent=1 // pred_check
      _
    $region35: #{tpu_custom_call.1} parent=1 // pred_check_branch
      %145 = sbr.rel (0) target = $region37
    $region36: #{tpu_custom_call.1} parent=1 // pred_region
      %147 = vsyncadd [#allocation4], 0
      %s149 = sshll.u32 [#allocation8], 4
      %s150 = int_to_ptr.vmem [resolvable:$true] %s149
      %s151 = sshll.u32 %s5, 4
      %s152 = int_to_ptr.hbm [resolvable:$true] %s151
      %154 = dma.vmem_to_hbm [thread:$0]  %s150, 128, %s152, [#allocation4]
    $region37: #{tpu_custom_call.1} parent=1 // pred_fallthru
      _
    // Predicated region
    $region38: #{tpu_custom_call.1} parent=1 // pred_check
      _
    $region39: #{tpu_custom_call.1} parent=1 // pred_check_branch
      %156 = sbr.rel (0) target = $region41
    $region40: #{tpu_custom_call.1} parent=1 // pred_region
      %158 = dma.done [#allocation4], 128
    $region41: #{tpu_custom_call.1} parent=1 // pred_fallthru
      _
    %159 = vsyncpa [#allocation3], 1
    %160 = vsyncpa [#allocation6], 1
    %161 = vsyncpa [#allocation4], 1

// kernel: tpu_custom_call.1
$region0: #{tpu_custom_call.1}
  #allocation0 [shape = 'u32[]', space=smem, size = 0x4, offset = 0x4, fixed_abs, tag = 'smem constant byte address 0x4 - core index']
  #allocation1 [shape = 'u32[72,128]{1,0:T(1,128)}', space=vmem, size = 0x9000, scoped, tag = 'internal scratch']
  %s0 = inlined_call_operand.hbm [shape: f32[8,32], index: 0, kind: input, shape index: {}]
  %s1 = inlined_call_operand.hbm [shape: f32[32,128], index: 1, kind: input, shape index: {}]
  %s2 = inlined_call_operand.vmem [shape: f32[1,128], index: 2, kind: input, shape index: {}]
  %s3 = inlined_call_operand.hbm [shape: f32[128,128], index: 3, kind: input, shape index: {}]
  %s4 = inlined_call_operand.vmem [shape: f32[1,128], index: 4, kind: input, shape index: {}]
  %s5 = inlined_call_operand.hbm [shape: f32[8,128], index: 5, kind: output, shape index: {}]
  %s6 = sld [smem:[#allocation0]]
  $region42: #{tpu_custom_call.1} parent=0
    _
  %s8 = ssub.s32 1, %s6
  %s9 = scalar_select 0, %s8, %s6
  $region1: #{tpu_custom_call.1} parent=0
    #allocation2 [shape = 'u8[4096]{0}', space=vmem, size = 0x1000, scoped, tag = 'input window, operand 0, single buffered']
    #allocation3 [shape = 's32[1]{0}', space=sflag, size = 0x4, scoped, tag = 'scoped memory for tpu_custom_call.1']
    #allocation4 [shape = 's32[1]{0}', space=sflag, size = 0x4, scoped, tag = 'scoped memory for tpu_custom_call.1']
    #allocation5 [shape = 'u8[16384]{0}', space=vmem, size = 0x4000, scoped, tag = 'input window, operand 1, single buffered']
    #allocation6 [shape = 's32[1]{0}', space=sflag, size = 0x4, scoped, tag = 'scoped memory for tpu_custom_call.1']
    #allocation7 [shape = 'u8[65536]{0}', space=vmem, size = 0x10000, scoped, tag = 'input window, operand 3, single buffered']
    #allocation8 [shape = 'u8[4096]{0}', space=vmem, size = 0x1000, scoped, tag = 'output window, operand 0, single buffered']
    %10 = vsyncpa [#allocation3], 0
    %11 = vsyncpa [#allocation6], 0
    %12 = vsyncpa [#allocation4], 0
    // Predicated region
    $region2: #{tpu_custom_call.1} parent=1 // pred_check
      _
    $region3: #{tpu_custom_call.1} parent=1 // pred_check_branch
      %14 = sbr.rel (0) target = $region5
    $region4: #{tpu_custom_call.1} parent=1 // pred_region
      %16 = vsyncadd [#allocation3], 0
      %s18 = sshll.u32 %s0, 4
      %s19 = int_to_ptr.hbm [resolvable:$true] %s18
      %s20 = sshll.u32 [#allocation2], 4
      %s21 = int_to_ptr.vmem [resolvable:$true] %s20
      %23 = dma.hbm_to_vmem [thread:$0]  %s19, 128, %s21, [#allocation3]
    $region5: #{tpu_custom_call.1} parent=1 // pred_fallthru
      _
    // Predicated region
    $region6: #{tpu_custom_call.1} parent=1 // pred_check
      _
    $region7: #{tpu_custom_call.1} parent=1 // pred_check_branch
      %25 = sbr.rel (0) target = $region9
    $region8: #{tpu_custom_call.1} parent=1 // pred_region
      %27 = vsyncadd [#allocation6], 0
      %s28 = sshll.u32 %s1, 4
      %s29 = int_to_ptr.hbm [resolvable:$true] %s28
      %s30 = sshll.u32 [#allocation5], 4
      %s31 = int_to_ptr.vmem [resolvable:$true] %s30
      %36 = dma.hbm_to_vmem [thread:$0]  %s29, 512, %s31, [#allocation6], 128, 128, 8
    $region9: #{tpu_custom_call.1} parent=1 // pred_fallthru
      _
    // Predicated region
    $region10: #{tpu_custom_call.1} parent=1 // pred_check
      _
    $region11: #{tpu_custom_call.1} parent=1 // pred_check_branch
      %38 = sbr.rel (0) target = $region13
    $region12: #{tpu_custom_call.1} parent=1 // pred_region
      _
    $region13: #{tpu_custom_call.1} parent=1 // pred_fallthru
      _
    // Predicated region
    $region14: #{tpu_custom_call.1} parent=1 // pred_check
      _
    $region15: #{tpu_custom_call.1} parent=1 // pred_check_branch
      %40 = sbr.rel (0) target = $region17
    $region16: #{tpu_custom_call.1} parent=1 // pred_region
      %42 = vsyncadd [#allocation6], 0
      %s43 = sshll.u32 %s3, 4
      %s44 = int_to_ptr.hbm [resolvable:$true] %s43
      %s45 = sshll.u32 [#allocation7], 4
      %s46 = int_to_ptr.vmem [resolvable:$true] %s45
      %51 = dma.hbm_to_vmem [thread:$0]  %s44, 2048, %s46, [#allocation6], 128, 128, 8
    $region17: #{tpu_custom_call.1} parent=1 // pred_fallthru
      _
    // Predicated region
    $region18: #{tpu_custom_call.1} parent=1 // pred_check
      _
    $region19: #{tpu_custom_call.1} parent=1 // pred_check_branch
      %53 = sbr.rel (0) target = $region21
    $region20: #{tpu_custom_call.1} parent=1 // pred_region
      _
    $region21: #{tpu_custom_call.1} parent=1 // pred_fallthru
      _
    // Predicated region
    $region22: #{tpu_custom_call.1} parent=1 // pred_check
      _
    $region23: #{tpu_custom_call.1} parent=1 // pred_check_branch
      %55 = sbr.rel (0) target = $region25
    $region24: #{tpu_custom_call.1} parent=1 // pred_region
      %57 = dma.done [#allocation3], 128
    $region25: #{tpu_custom_call.1} parent=1 // pred_fallthru
      _
    // Predicated region
    $region26: #{tpu_custom_call.1} parent=1 // pred_check
      _
    $region27: #{tpu_custom_call.1} parent=1 // pred_check_branch
      %59 = sbr.rel (0) target = $region29
    $region28: #{tpu_custom_call.1} parent=1 // pred_region
      %61 = dma.done [#allocation6], 512
    $region29: #{tpu_custom_call.1} parent=1 // pred_fallthru
      _
    // Predicated region
    $region30: #{tpu_custom_call.1} parent=1 // pred_check
      _
    $region31: #{tpu_custom_call.1} parent=1 // pred_check_branch
      %63 = sbr.rel (0) target = $region33
    $region32: #{tpu_custom_call.1} parent=1 // pred_region
      %65 = dma.done [#allocation6], 2048
    $region33: #{tpu_custom_call.1} parent=1 // pred_fallthru
      _
    %v66 = vld [vmem:[#allocation2] sm:$0xff]
    %v67 = vld [vmem:[#allocation5] sm:$0xff]
    %v68 = vld [vmem:[#allocation5 + $0x8] sm:$0xff]
    %v69 = vld [vmem:[#allocation5 + $0x10] sm:$0xff]
    %v70 = vld [vmem:[#allocation5 + $0x18] sm:$0xff]
    %v71 = vld [vmem:[%s2] sm:$0x1]
    %v73 = vperm.slane %v71, 0
    %vm75 = vcmask 261120
    %v77 = vsel %vm75, %v66, 0
    %79 = vmatpush.msra.mxu0 0.0
    %80 = vmatpush.msra.mxu0 0.0
    %81 = vmatpush.msra.mxu0 0.0
    %82 = vmatpush.msra.mxu0 0.0
    %83 = vmatpush.msra.mxu0 0.0
    %84 = vmatpush.msra.mxu0 0.0
    %85 = vmatpush.msra.mxu0 0.0
    %86 = vmatpush.msra.mxu0 0.0
    %87 = vmatpush.msra.mxu0 0.0
    %88 = vmatpush.msra.mxu0 0.0
    %89 = vmatpush.msra.mxu0 0.0
    %90 = vmatpush.msra.mxu0 0.0
    %91 = vmatpush.msra.mxu0 %v70
    %92 = vmatpush.msra.mxu0 %v69
    %93 = vmatpush.msra.mxu0 %v68
    %94 = vmatpush.msra.mxu0 %v67
    %95 = vmatmul.f32.gmra.mxu0 %v77
    %v96 = vpop.f32.mrf.mxu0
    %v97 = vadd.f32 %v73, %v96
    %98 = vdwg.mxu0
    %v99 = vmul.f32 %v97, 0.5
    %v100 = vtanh.pop %v99
    %v101 = vadd.f32 %v100, 1.0
    %v102 = vmul.f32 %v101, 0.5
    %v103 = vld [vmem:[#allocation7] sm:$0xff]
    %v104 = vld [vmem:[#allocation7 + $0x8] sm:$0xff]
    %v105 = vld [vmem:[#allocation7 + $0x10] sm:$0xff]
    %v106 = vld [vmem:[#allocation7 + $0x18] sm:$0xff]
    %v107 = vld [vmem:[#allocation7 + $0x20] sm:$0xff]
    %v108 = vld [vmem:[#allocation7 + $0x28] sm:$0xff]
    %v109 = vld [vmem:[#allocation7 + $0x30] sm:$0xff]
    %v110 = vld [vmem:[#allocation7 + $0x38] sm:$0xff]
    %v111 = vld [vmem:[#allocation7 + $0x40] sm:$0xff]
    %v112 = vld [vmem:[#allocation7 + $0x48] sm:$0xff]
    %v113 = vld [vmem:[#allocation7 + $0x50] sm:$0xff]
    %v114 = vld [vmem:[#allocation7 + $0x58] sm:$0xff]
    %v115 = vld [vmem:[#allocation7 + $0x60] sm:$0xff]
    %v116 = vld [vmem:[#allocation7 + $0x68] sm:$0xff]
    %v117 = vld [vmem:[#allocation7 + $0x70] sm:$0xff]
    %v118 = vld [vmem:[#allocation7 + $0x78] sm:$0xff]
    %v119 = vld [vmem:[%s4] sm:$0x1]
    %v121 = vperm.slane %v119, 0
    %123 = vmatpush.msra.mxu0 %v118
    %124 = vmatpush.msra.mxu0 %v117
    %125 = vmatpush.msra.mxu0 %v116
    %126 = vmatpush.msra.mxu0 %v115
    %127 = vmatpush.msra.mxu0 %v114
    %128 = vmatpush.msra.mxu0 %v113
    %129 = vmatpush.msra.mxu0 %v112
    %130 = vmatpush.msra.mxu0 %v111
    %131 = vmatpush.msra.mxu0 %v110
    %132 = vmatpush.msra.mxu0 %v109
    %133 = vmatpush.msra.mxu0 %v108
    %134 = vmatpush.msra.mxu0 %v107
    %135 = vmatpush.msra.mxu0 %v106
    %136 = vmatpush.msra.mxu0 %v105
    %137 = vmatpush.msra.mxu0 %v104
    %138 = vmatpush.msra.mxu0 %v103
    %139 = vmatmul.f32.gmra.mxu0 %v102
    %v140 = vpop.f32.mrf.mxu0
    %v141 = vadd.f32 %v121, %v140
    %142 = vdwg.mxu0
    %143 = vst [vmem:[#allocation8] sm:$0xff] %v141
    // Predicated region
    $region34: #{tpu_custom_call.1} parent=1 // pred_check
      _
    $region35: #{tpu_custom_call.1} parent=1 // pred_check_branch
      %145 = sbr.rel (0) target = $region37
    $region36: #{tpu_custom_call.1} parent=1 // pred_region
      %147 = vsyncadd [#allocation4], 0
      %s149 = sshll.u32 [#allocation8], 4
      %s150 = int_to_ptr.vmem [resolvable:$true] %s149
      %s151 = sshll.u32 %s5, 4
      %s152 = int_to_ptr.hbm [resolvable:$true] %s151
      %154 = dma.vmem_to_hbm [thread:$0]  %s150, 128, %s152, [#allocation4]
    $region37: #{tpu_custom_call.1} parent=1 // pred_fallthru
      _
    // Predicated region
    $region38: #{tpu_custom_call.1} parent=1 // pred_check
      _
    $region39: #{tpu_custom_call.1} parent=1 // pred_check_branch
      %156 = sbr.rel (0) target = $region41
    $region40: #{tpu_custom_call.1} parent=1 // pred_region
      %158 = dma.done [#allocation4], 128
    $region41: #{tpu_custom_call.1} parent=1 // pred_fallthru
      _
    %159 = vsyncpa [#allocation3], 1
    %160 = vsyncpa [#allocation6], 1
    %161 = vsyncpa [#allocation4], 1

</llo_original>
